<compile_context>
chip_gen: v7x
topology: tpu7x:2x2x1
jax: 0.10.0
libtpu: 0.0.40
codegen_flags: <defaults>
</compile_context>

<pallas_src>
import functools

import jax
import jax.numpy as jnp
from jax.experimental import pallas as pl
from jax.experimental.pallas import tpu as pltpu

LN_EPS = 1e-5                       # torch.nn.LayerNorm default


def _ceil_to(x, m):
    return ((x + m - 1) // m) * m


@functools.lru_cache(maxsize=1)
def _vmem_limit():
    """Per-generation scoped-VMEM budget: ~75% of physical VMEM.

    ~96 MiB on v5e/v6e (128 MiB physical), ~48 MiB on v7x (64 MiB physical).
    Falls back to a conservative 48 MiB if the query is unavailable.
    """
    try:
        cap = pltpu.get_tpu_info().vmem_capacity_bytes
        return int(cap * 3 // 4)
    except Exception:
        return 48 * 1024 * 1024


def _ln_masked(x, gamma, beta, d_real):
    """LayerNorm over the last dim, correct under zero-padded feature lanes.

    Assumes padded columns (index >= d_real) of `x` are zero (maintained by
    construction throughout the model).  gamma/beta are zero in padded lanes,
    so the output also has zero padded lanes.
    """
    d_pad = x.shape[-1]
    inv_d = jnp.float32(1.0 / d_real)
    mu = jnp.sum(x, axis=-1, keepdims=True) * inv_d            # pad lanes are 0
    xc = x - mu
    if d_pad != d_real:                                        # static check
        lane = jax.lax.broadcasted_iota(jnp.int32, x.shape, x.ndim - 1)
        xc = jnp.where(lane < d_real, xc, 0.0)
    var = jnp.sum(xc * xc, axis=-1, keepdims=True) * inv_d
    return xc * jax.lax.rsqrt(var + LN_EPS) * gamma + beta


# ----------------------------- Pallas kernels --------------------------------

def _conv_matmul_kernel(p_ref, w_ref, b_ref, o_ref):
    # conv-as-matmul: f32 patch tile (TM, Kp) cast to bf16 in-kernel (free VPU
    # op, halves the patch HBM traffic vs a JAX-side cast pass) @ resident
    # (Kp, Op) bf16 weight -> f32 accumulate, + f32 bias.
    p = p_ref[...].astype(jnp.bfloat16)
    o_ref[...] = (jnp.dot(p, w_ref[...], preferred_element_type=jnp.float32)
                  + b_ref[...])


def _make_stage_kernel(d_real, depth):
    """All MetaFormerBlocks of one stage applied to a single token tile.

    Weights/LN params are VMEM-resident (constant index_maps); the depth loop
    is fully unrolled in-kernel (depth is a small static int), so tokens are
    read/written from HBM exactly once per stage.
    """

    def kernel(x_ref, ln_ref, w1_ref, w2_ref, o_ref):
        x = x_ref[...]                                   # (TN, Dp) f32
        for l in range(depth):                           # static unrolled loop
            lnp = ln_ref[l]                              # (4, Dp) f32
            g1, b1 = lnp[0:1, :], lnp[1:2, :]
            g2, b2 = lnp[2:3, :], lnp[3:4, :]
            # x = x + norm1(x)  (token_mixer/drop_path/layer_scale/res_scale = Identity)
            x = x + _ln_masked(x, g1, b1, d_real)
            # x = x + fc2(relu(fc1(norm2(x))))  (bias-free MLP, dropout p = 0)
            y = _ln_masked(x, g2, b2, d_real)
            h = jnp.maximum(
                jnp.dot(y.astype(jnp.bfloat16), w1_ref[l],
                        preferred_element_type=jnp.float32), 0.0)
            x = x + jnp.dot(h.astype(jnp.bfloat16), w2_ref[l],
                            preferred_element_type=jnp.float32)
        o_ref[...] = x

    return kernel


def _make_head_kernel(d_real):
    def kernel(x_ref, g_ref, b_ref, w_ref, bh_ref, o_ref):
        y = _ln_masked(x_ref[...], g_ref[...], b_ref[...], d_real)
        o_ref[...] = (jnp.dot(y, w_ref[...], preferred_element_type=jnp.float32)
                      + bh_ref[...])
    return kernel


# ------------------------------ call wrappers ---------------------------------

def conv_matmul(patches, w_pad, b_pad, *, tile_m=512):
    """patches (N, Kp) f32  @  w_pad (Kp, Op) bf16  + b_pad (1, Op) f32.

    Returns the lane-padded (N, Op) output (padded channels are exactly zero
    because the padded weight columns / bias lanes are zero).
    """
    n, kp = patches.shape
    op = w_pad.shape[1]
    tm = min(tile_m, _ceil_to(n, 8))
    npad = _ceil_to(n, tm)
    if npad != n:
        patches = jnp.pad(patches, ((0, npad - n), (0, 0)))
    out = pl.pallas_call(
        _conv_matmul_kernel,
        out_shape=jax.ShapeDtypeStruct((npad, op), jnp.float32),
        grid=(npad // tm,),
        in_specs=[pl.BlockSpec((tm, kp), lambda i: (i, 0)),   # f32 patches (stream)
                  pl.BlockSpec((kp, op), lambda i: (0, 0)),   # bf16 weight (resident)
                  pl.BlockSpec((1, op), lambda i: (0, 0))],   # f32 bias    (resident)
        out_specs=pl.BlockSpec((tm, op), lambda i: (i, 0)),
        compiler_params=pltpu.CompilerParams(
            dimension_semantics=("parallel",),
            vmem_limit_bytes=int(_vmem_limit())),
    )(patches, w_pad, b_pad)
    return out[:n] if npad != n else out


def run_stage(tok, sp, *, tile_n=512):
    """Apply all blocks of one stage to lane-padded tokens (N, Dp) -> (N, Dp)."""
    n, dp = tok.shape
    depth = sp["depth"]
    hp = sp["w1"].shape[-1]
    L = sp["w1"].shape[0]
    assert dp == sp["ln"].shape[-1], "token lane padding must match stage params"
    tn = min(tile_n, _ceil_to(n, 8))
    npad = _ceil_to(n, tn)
    if npad != n:
        tok = jnp.pad(tok, ((0, npad - n), (0, 0)))
    out = pl.pallas_call(
        _make_stage_kernel(sp["d"], depth),
        out_shape=jax.ShapeDtypeStruct((npad, dp), jnp.float32),
        grid=(npad // tn,),
        in_specs=[pl.BlockSpec((tn, dp), lambda i: (i, 0)),        # tokens (stream)
                  pl.BlockSpec((L, 4, dp), lambda i: (0, 0, 0)),   # LN params (resident)
                  pl.BlockSpec((L, dp, hp), lambda i: (0, 0, 0)),  # fc1 weights (resident)
                  pl.BlockSpec((L, hp, dp), lambda i: (0, 0, 0))], # fc2 weights (resident)
        out_specs=pl.BlockSpec((tn, dp), lambda i: (i, 0)),
        input_output_aliases={0: 0},                               # in-place token update
        compiler_params=pltpu.CompilerParams(
            dimension_semantics=("parallel",),
            vmem_limit_bytes=int(_vmem_limit())),
    )(tok, sp["ln"], sp["w1"], sp["w2"])
    return out[:n] if npad != n else out


def head_forward(x_nhwc, hpar):
    """x.mean([1,2]) -> LayerNorm -> Linear.  Consumes lane-padded activations."""
    b = x_nhwc.shape[0]
    nc = hpar["num_classes"]
    dp = hpar["g"].shape[-1]
    cp = hpar["w"].shape[-1]
    assert x_nhwc.shape[-1] == dp
    pooled = jnp.mean(x_nhwc, axis=(1, 2))            # (B, Dp); padded lanes stay 0
    bp = _ceil_to(b, 8)
    if bp != b:
        pooled = jnp.pad(pooled, ((0, bp - b), (0, 0)))
    out = pl.pallas_call(
        _make_head_kernel(hpar["d"]),
        out_shape=jax.ShapeDtypeStruct((bp, cp), jnp.float32),
        grid=(1,),
        in_specs=[pl.BlockSpec((bp, dp), lambda i: (0, 0)),
                  pl.BlockSpec((1, dp), lambda i: (0, 0)),
                  pl.BlockSpec((1, dp), lambda i: (0, 0)),
                  pl.BlockSpec((dp, cp), lambda i: (0, 0)),
                  pl.BlockSpec((1, cp), lambda i: (0, 0))],
        out_specs=pl.BlockSpec((bp, cp), lambda i: (0, 0)),
        compiler_params=pltpu.CompilerParams(
            dimension_semantics=("arbitrary",),
            vmem_limit_bytes=int(_vmem_limit())),
    )(pooled, hpar["g"], hpar["b"], hpar["w"], hpar["bh"])
    return out[:b, :nc]


# ------------------------- Downsampling (conv 3x3 s2 p1) ----------------------

def _im2col_nhwc(x_nchw, k, s, p, kp):
    # x interpreted as (B, C, H, W); emit patches directly in channels-last
    # (B, Ho, Wo, Kp) order.  The lane padding of the contraction dim (K -> Kp)
    # is folded into the same concatenate (one extra zero block), so the patch
    # tensor is materialized exactly once and already lane-aligned.
    x = jnp.transpose(x_nchw, (0, 2, 3, 1))                     # (B, H, W, C)
    xp = jnp.pad(x, ((0, 0), (p, p), (p, p), (0, 0)))
    B, Hp_, Wp_, C = xp.shape
    Ho = (Hp_ - k) // s + 1
    Wo = (Wp_ - k) // s + 1
    taps = [xp[:, kh:kh + s * Ho:s, kw:kw + s * Wo:s, :]        # (B, Ho, Wo, C)
            for kh in range(k) for kw in range(k)]
    if kp > k * k * C:
        taps.append(jnp.zeros((B, Ho, Wo, kp - k * k * C), x.dtype))
    patches = jnp.concatenate(taps, axis=-1)                    # (B, Ho, Wo, Kp)
    return patches.reshape(B * Ho * Wo, kp), Ho, Wo


def downsampling(x, dpar, *, k=3, s=2, p=1):
    # nn.Conv2d semantics: axis 1 of x is channels.  The reference feeds
    # channels-last activations with pre_permute=False, which requires
    # H == dims[i]; assert so mis-shaped inputs fail loudly.
    assert x.shape[1] == dpar["cin"], (
        f"Downsampling expects {dpar['cin']} channels on axis 1, got {x.shape[1]} "
        "(reference model with pre_permute=False requires H == dims[i])")
    B = x.shape[0]
    patches, Ho, Wo = _im2col_nhwc(x, k, s, p, dpar["kp"])
    out = conv_matmul(patches, dpar["w2d"], dpar["b"])          # (N, Op) lane-padded
    return out.reshape(B, Ho, Wo, out.shape[-1])                # == conv(x).permute(0,2,3,1)


# ------------------------------- full model -----------------------------------

def init_metaformer_params(key, in_chans, depths, dims, num_classes):
    """Params are produced already stacked / lane-padded / cast for the kernels."""
    params = {"down": [], "stages": []}
    down_dims = [in_chans] + list(dims)
    for i in range(len(depths)):
        key, k1, k2 = jax.random.split(key, 3)
        cin, cout = down_dims[i], down_dims[i + 1]
        conv_w = 0.1 * jax.random.normal(k1, (cout, cin, 3, 3), jnp.float32)
        conv_b = 0.1 * jax.random.normal(k2, (cout,), jnp.float32)
        kdim = cin * 9
        kp, op = _ceil_to(kdim, 128), _ceil_to(cout, 128)
        # flatten weight in (kh, kw, C) order to match _im2col_nhwc tap order
        w2d = conv_w.transpose(2, 3, 1, 0).reshape(kdim, cout)
        params["down"].append({
            "w2d": jnp.pad(w2d, ((0, kp - kdim), (0, op - cout))).astype(jnp.bfloat16),
            "b": jnp.pad(conv_b, (0, op - cout)).reshape(1, op),
            "cin": cin, "cout": cout, "kp": kp,
        })

        d = dims[i]
        hidden = 4 * d                                # mlp_ratio = 4
        dp, hp = _ceil_to(d, 128), _ceil_to(hidden, 128)
        ln_rows, w1s, w2s = [], [], []
        for _ in range(depths[i]):
            key, k3, k4 = jax.random.split(key, 3)
            g = jnp.pad(jnp.ones((d,), jnp.float32), (0, dp - d))   # LN gamma (padded 0)
            z = jnp.zeros((dp,), jnp.float32)                       # LN beta
            ln_rows.append(jnp.stack([g, z, g, z]))                 # (4, Dp): g1,b1,g2,b2
            w1 = 0.1 * jax.random.normal(k3, (d, hidden), jnp.float32)   # fc1, bias=False
            w2 = 0.1 * jax.random.normal(k4, (hidden, d), jnp.float32)   # fc2, bias=False
            w1s.append(jnp.pad(w1, ((0, dp - d), (0, hp - hidden))))
            w2s.append(jnp.pad(w2, ((0, hp - hidden), (0, dp - d))))
        params["stages"].append({
            "ln": jnp.stack(ln_rows),                          # (L, 4, Dp) f32
            "w1": jnp.stack(w1s).astype(jnp.bfloat16),         # (L, Dp, Hp)
            "w2": jnp.stack(w2s).astype(jnp.bfloat16),         # (L, Hp, Dp)
            "d": d, "depth": depths[i],
        })

    key, k5, k6 = jax.random.split(key, 3)
    d_last = dims[-1]
    dpl = _ceil_to(d_last, 128)
    cp = _ceil_to(num_classes, 128)
    head_w = 0.1 * jax.random.normal(k5, (d_last, num_classes), jnp.float32)
    head_b = 0.1 * jax.random.normal(k6, (num_classes,), jnp.float32)
    params["head"] = {
        "g": jnp.pad(jnp.ones((d_last,), jnp.float32), (0, dpl - d_last)).reshape(1, dpl),
        "b": jnp.zeros((1, dpl), jnp.float32),
        "w": jnp.pad(head_w, ((0, dpl - d_last), (0, cp - num_classes))),
        "bh": jnp.pad(head_b, (0, cp - num_classes)).reshape(1, cp),
        "d": d_last, "num_classes": num_classes,
    }
    return params


def metaformer_forward(x, params):
    # Dropout / DropPath have p=0 in the default config -> identity.
    n_stages = len(params["stages"])
    for i in range(n_stages):
        if i > 0:
            # Strip feature-lane padding before the conv: with pre_permute=False
            # the last dim is the conv's spatial W, so it must be the real dim.
            x = x[..., :params["stages"][i - 1]["d"]]
        x = downsampling(x, params["down"][i])        # (B, Ho, Wo, Dp) channels-last, f32
        B, H, W, Dp = x.shape
        tok = x.reshape(B * H * W, Dp)
        tok = run_stage(tok, params["stages"][i])     # all blocks of the stage, one call
        x = tok.reshape(B, H, W, Dp)
    return head_forward(x, params["head"])            # mean([1,2]) -> LN -> head


if __name__ == "__main__":
    key = jax.random.PRNGKey(0)
    in_chans, num_classes = 3, 10
    depths, dims = [1, 1], [8, 16]
    kx, kparams = jax.random.split(key)
    # H = W = 16 so that stage-0's spatial size (8) equals dims[0]; the reference
    # code (pre_permute=False everywhere) implicitly requires this for stage 1's
    # Conv2d to be well-formed.
    x = jax.random.normal(kx, (2, in_chans, 16, 16), jnp.float32)
    params = init_metaformer_params(kparams, in_chans, depths, dims, num_classes)
    out = metaformer_forward(x, params)
    out = jax.block_until_ready(out)
    assert out.shape == (2, num_classes) and out.dtype == jnp.float32
    print("KERNEL_OK")
</pallas_src>

<mosaic_0001>
module attributes {stable_mosaic.version = 11 : i64} {
  func.func @_conv_matmul_kernel(%arg0: i32, %arg1: memref<128x128xf32, #tpu.memory_space<vmem>>, %arg2: memref<128x128xbf16, #tpu.memory_space<vmem>>, %arg3: memref<1x128xf32, #tpu.memory_space<vmem>>, %arg4: memref<128x128xf32, #tpu.memory_space<vmem>>) attributes {dimension_semantics = [#tpu.dimension_semantics<parallel>], iteration_bounds = array<i64: 1>, scalar_prefetch = 0 : i64, scratch_operands = 0 : i64, tpu.core_type = #tpu.core_type<tc>, window_params = [{transform_indices = @transform_0, window_bounds = array<i64: 128, 128>}, {pipeline_mode = #tpu.pipeline_mode<synchronous>, transform_indices = @transform_1, window_bounds = array<i64: 128, 128>}, {pipeline_mode = #tpu.pipeline_mode<synchronous>, transform_indices = @transform_2, window_bounds = array<i64: 1, 128>}, {transform_indices = @transform_3, window_bounds = array<i64: 128, 128>}]} {
    %c0 = arith.constant 0 : index
    %c0_0 = arith.constant 0 : index
    %0 = vector.load %arg1[%c0, %c0_0] : memref<128x128xf32, #tpu.memory_space<vmem>>, vector<128x128xf32>
    %1 = arith.truncf %0 : vector<128x128xf32> to vector<128x128xbf16>
    %c0_1 = arith.constant 0 : index
    %c0_2 = arith.constant 0 : index
    %2 = vector.load %arg2[%c0_1, %c0_2] : memref<128x128xbf16, #tpu.memory_space<vmem>>, vector<128x128xbf16>
    %cst = arith.constant dense<0.000000e+00> : vector<128x128xf32>
    %3 = tpu.matmul %1, %2, %cst {dimension_numbers = #tpu.dot_dimension_numbers<[1], [0], [0], [1], [0, 0, 1, 1], [], []>} : vector<128x128xbf16>, vector<128x128xbf16>, vector<128x128xf32> -> vector<128x128xf32>
    %c0_3 = arith.constant 0 : index
    %c0_4 = arith.constant 0 : index
    %4 = vector.load %arg3[%c0_3, %c0_4] : memref<1x128xf32, #tpu.memory_space<vmem>>, vector<1x128xf32>
    %5 = vector.broadcast %4 : vector<1x128xf32> to vector<128x128xf32>
    %6 = arith.addf %3, %5 : vector<128x128xf32>
    %c0_5 = arith.constant 0 : index
    %c0_6 = arith.constant 0 : index
    %7 = vector.load %arg4[%c0_5, %c0_6] : memref<128x128xf32, #tpu.memory_space<vmem>>, vector<128x128xf32>
    tpu.vector_store %arg4[%c0_5, %c0_6], %6 {strides = array<i32>} : memref<128x128xf32, #tpu.memory_space<vmem>>, vector<128x128xf32>,
    return
  }
  func.func @transform_0(%arg0: i32) -> (i32, i32) {
    %c0_i32 = arith.constant 0 : i32
    %c0_i32_0 = arith.constant 0 : i32
    return %arg0, %c0_i32 : i32, i32
  }
  func.func @transform_1(%arg0: i32) -> (i32, i32) {
    %c0_i32 = arith.constant 0 : i32
    %c0_i32_0 = arith.constant 0 : i32
    %c0_i32_1 = arith.constant 0 : i32
    return %c0_i32, %c0_i32_0 : i32, i32
  }
  func.func @transform_2(%arg0: i32) -> (i32, i32) {
    %c0_i32 = arith.constant 0 : i32
    %c0_i32_0 = arith.constant 0 : i32
    %c0_i32_1 = arith.constant 0 : i32
    return %c0_i32, %c0_i32_0 : i32, i32
  }
  func.func @transform_3(%arg0: i32) -> (i32, i32) {
    %c0_i32 = arith.constant 0 : i32
    %c0_i32_0 = arith.constant 0 : i32
    return %arg0, %c0_i32 : i32, i32
  }
}

</mosaic_0001>

<llo_original>
// kernel: tpu_custom_call.1
$region0: #{tpu_custom_call.1}
  #allocation0 [shape = 'u32[]', space=smem, size = 0x4, offset = 0x4, fixed_abs, tag = 'smem constant byte address 0x4 - core index']
  #allocation1 [shape = 'u32[144,128]{1,0:T(1,128)}', space=vmem, size = 0x12000, scoped, tag = 'internal scratch']
  %s0 = inlined_call_operand.hbm [shape: f32[128,128], index: 0, kind: input, shape index: {}]
  %s1 = inlined_call_operand.hbm [shape: bf16[128,128], index: 1, kind: input, shape index: {}]
  %s2 = inlined_call_operand.vmem [shape: f32[1,128], index: 2, kind: input, shape index: {}]
  %s3 = inlined_call_operand.hbm [shape: f32[128,128], index: 3, kind: output, shape index: {}]
  %s4 = sld [smem:[#allocation0]]
  $region30: #{tpu_custom_call.1} parent=0
    _
  %s6 = ssub.s32 1, %s4
  %s7 = scalar_select 0, %s6, %s4
  $region1: #{tpu_custom_call.1} parent=0
    #allocation2 [shape = 'u8[65536]{0}', space=vmem, size = 0x10000, scoped, tag = 'input window, operand 0, single buffered']
    #allocation3 [shape = 's32[1]{0}', space=sflag, size = 0x4, scoped, tag = 'scoped memory for tpu_custom_call.1']
    #allocation4 [shape = 's32[1]{0}', space=sflag, size = 0x4, scoped, tag = 'scoped memory for tpu_custom_call.1']
    #allocation5 [shape = 'u8[32768]{0}', space=vmem, size = 0x8000, scoped, tag = 'input window, operand 1, single buffered']
    #allocation6 [shape = 's32[1]{0}', space=sflag, size = 0x4, scoped, tag = 'scoped memory for tpu_custom_call.1']
    #allocation7 [shape = 'u8[65536]{0}', space=vmem, size = 0x10000, scoped, tag = 'output window, operand 0, single buffered']
    %8 = vsyncpa [#allocation3], 0
    %9 = vsyncpa [#allocation6], 0
    %10 = vsyncpa [#allocation4], 0
    // Predicated region
    $region2: #{tpu_custom_call.1} parent=1 // pred_check
      _
    $region3: #{tpu_custom_call.1} parent=1 // pred_check_branch
      %12 = sbr.rel (0) target = $region5
    $region4: #{tpu_custom_call.1} parent=1 // pred_region
      %s14 = ssub.s32 2048, 2048
      %15 = vsyncadd [#allocation3], %s14
      %s16 = sshll.u32 [#allocation2], 4
      %s17 = int_to_ptr.vmem [resolvable:$true] %s16
      %22 = dma.hbm_to_vmem [thread:$0]  %s0, 2048, %s17, [#allocation3], 128, 128, 8
    $region5: #{tpu_custom_call.1} parent=1 // pred_fallthru
      _
    // Predicated region
    $region6: #{tpu_custom_call.1} parent=1 // pred_check
      _
    $region7: #{tpu_custom_call.1} parent=1 // pred_check_branch
      %24 = sbr.rel (0) target = $region9
    $region8: #{tpu_custom_call.1} parent=1 // pred_region
      %s26 = ssub.s32 1024, 1024
      %27 = vsyncadd [#allocation6], %s26
      %s28 = sshll.u32 [#allocation5], 4
      %s29 = int_to_ptr.vmem [resolvable:$true] %s28
      %34 = dma.hbm_to_vmem [thread:$0]  %s1, 1024, %s29, [#allocation6], 64, 64, 4
    $region9: #{tpu_custom_call.1} parent=1 // pred_fallthru
      _
    // Predicated region
    $region10: #{tpu_custom_call.1} parent=1 // pred_check
      _
    $region11: #{tpu_custom_call.1} parent=1 // pred_check_branch
      %36 = sbr.rel (0) target = $region13
    $region12: #{tpu_custom_call.1} parent=1 // pred_region
      _
    $region13: #{tpu_custom_call.1} parent=1 // pred_fallthru
      _
    // Predicated region
    $region14: #{tpu_custom_call.1} parent=1 // pred_check
      _
    $region15: #{tpu_custom_call.1} parent=1 // pred_check_branch
      %38 = sbr.rel (0) target = $region17
    $region16: #{tpu_custom_call.1} parent=1 // pred_region
      %39 = dma.done [#allocation3], 2048
    $region17: #{tpu_custom_call.1} parent=1 // pred_fallthru
      _
    // Predicated region
    $region18: #{tpu_custom_call.1} parent=1 // pred_check
      _
    $region19: #{tpu_custom_call.1} parent=1 // pred_check_branch
      %41 = sbr.rel (0) target = $region21
    $region20: #{tpu_custom_call.1} parent=1 // pred_region
      %42 = dma.done [#allocation6], 1024
    $region21: #{tpu_custom_call.1} parent=1 // pred_fallthru
      _
    %v44 = vld [vmem:[#allocation2] sm:$0xff]
    %v45 = vld [vmem:[#allocation2 + $0x8] sm:$0xff]
    %v46 = vld [vmem:[#allocation2 + $0x10] sm:$0xff]
    %v47 = vld [vmem:[#allocation2 + $0x18] sm:$0xff]
    %v48 = vld [vmem:[#allocation2 + $0x20] sm:$0xff]
    %v49 = vld [vmem:[#allocation2 + $0x28] sm:$0xff]
    %v50 = vld [vmem:[#allocation2 + $0x30] sm:$0xff]
    %v51 = vld [vmem:[#allocation2 + $0x38] sm:$0xff]
    %v52 = vld [vmem:[#allocation2 + $0x40] sm:$0xff]
    %v53 = vld [vmem:[#allocation2 + $0x48] sm:$0xff]
    %v54 = vld [vmem:[#allocation2 + $0x50] sm:$0xff]
    %v55 = vld [vmem:[#allocation2 + $0x58] sm:$0xff]
    %v56 = vld [vmem:[#allocation2 + $0x60] sm:$0xff]
    %v57 = vld [vmem:[#allocation2 + $0x68] sm:$0xff]
    %v58 = vld [vmem:[#allocation2 + $0x70] sm:$0xff]
    %v59 = vld [vmem:[#allocation2 + $0x78] sm:$0xff]
    %v60 = vpack.c.bf16 %v45, %v44
    %v61 = vpack.c.bf16 %v47, %v46
    %v62 = vpack.c.bf16 %v49, %v48
    %v63 = vpack.c.bf16 %v51, %v50
    %v64 = vpack.c.bf16 %v53, %v52
    %v65 = vpack.c.bf16 %v55, %v54
    %v66 = vpack.c.bf16 %v57, %v56
    %v67 = vpack.c.bf16 %v59, %v58
    %v68 = vld [vmem:[#allocation5] sm:$0xf]
    %v69 = vld [vmem:[#allocation5 + $0x4] sm:$0xf]
    %v70 = vld [vmem:[#allocation5 + $0x8] sm:$0xf]
    %v71 = vld [vmem:[#allocation5 + $0xc] sm:$0xf]
    %v72 = vld [vmem:[#allocation5 + $0x10] sm:$0xf]
    %v73 = vld [vmem:[#allocation5 + $0x14] sm:$0xf]
    %v74 = vld [vmem:[#allocation5 + $0x18] sm:$0xf]
    %v75 = vld [vmem:[#allocation5 + $0x1c] sm:$0xf]
    %v76 = vld [vmem:[#allocation5 + $0x20] sm:$0xf]
    %v77 = vld [vmem:[#allocation5 + $0x24] sm:$0xf]
    %v78 = vld [vmem:[#allocation5 + $0x28] sm:$0xf]
    %v79 = vld [vmem:[#allocation5 + $0x2c] sm:$0xf]
    %v80 = vld [vmem:[#allocation5 + $0x30] sm:$0xf]
    %v81 = vld [vmem:[#allocation5 + $0x34] sm:$0xf]
    %v82 = vld [vmem:[#allocation5 + $0x38] sm:$0xf]
    %v83 = vld [vmem:[#allocation5 + $0x3c] sm:$0xf]
    %v84 = vld [vmem:[%s2] sm:$0x1]
    %v86 = vlaneseq
    %v87 = vshrl.u32 %v86, 7
    %v88 = vsub.s32 0, %v87
    %v89 = vrot.slane %v84, %v88
    %v107 = vunpack.c.l.b16 %v68
    %v108 = vunpack.c.l.b16 %v69
    %v109 = vunpack.c.l.b16 %v70
    %v110 = vunpack.c.l.b16 %v71
    %v111 = vunpack.c.l.b16 %v72
    %v112 = vunpack.c.l.b16 %v73
    %v113 = vunpack.c.l.b16 %v74
    %v114 = vunpack.c.l.b16 %v75
    %v115 = vunpack.c.l.b16 %v76
    %v116 = vunpack.c.l.b16 %v77
    %v117 = vunpack.c.l.b16 %v78
    %v118 = vunpack.c.l.b16 %v79
    %v119 = vunpack.c.l.b16 %v80
    %v120 = vunpack.c.l.b16 %v81
    %v121 = vunpack.c.l.b16 %v82
    %v122 = vunpack.c.l.b16 %v83
    %v123 = vpack.c.b16 %v108, %v107
    %v124 = vpack.c.b16 %v110, %v109
    %v125 = vpack.c.b16 %v112, %v111
    %v126 = vpack.c.b16 %v114, %v113
    %v127 = vpack.c.b16 %v116, %v115
    %v128 = vpack.c.b16 %v118, %v117
    %v129 = vpack.c.b16 %v120, %v119
    %v130 = vpack.c.b16 %v122, %v121
    %139 = vmatprep.subr.bf16.mxu0 0
    %140 = vmatpush1.bf16.msra.mxu0 %v123
    %141 = vmatprep.subr.bf16.mxu0 0
    %142 = vmatpush1.bf16.msra.mxu0 %v124
    %143 = vmatprep.subr.bf16.mxu0 0
    %144 = vmatpush1.bf16.msra.mxu0 %v125
    %145 = vmatprep.subr.bf16.mxu0 0
    %146 = vmatpush1.bf16.msra.mxu0 %v126
    %147 = vmatprep.subr.bf16.mxu0 0
    %148 = vmatpush1.bf16.msra.mxu0 %v127
    %149 = vmatprep.subr.bf16.mxu0 0
    %150 = vmatpush1.bf16.msra.mxu0 %v128
    %151 = vmatprep.subr.bf16.mxu0 0
    %152 = vmatpush1.bf16.msra.mxu0 %v129
    %153 = vmatprep.subr.bf16.mxu0 0
    %154 = vmatpush1.bf16.msra.mxu0 %v130
    %155 = vmatprep.subr.bf16.mxu0 0
    %156 = vmatpush1.bf16.msra.mxu0 0
    %157 = vmatprep.subr.bf16.mxu0 0
    %158 = vmatpush1.bf16.msra.mxu0 0
    %159 = vmatprep.subr.bf16.mxu0 0
    %160 = vmatpush1.bf16.msra.mxu0 0
    %161 = vmatprep.subr.bf16.mxu0 0
    %162 = vmatpush1.bf16.msra.mxu0 0
    %163 = vmatprep.subr.bf16.mxu0 0
    %164 = vmatpush1.bf16.msra.mxu0 0
    %165 = vmatprep.subr.bf16.mxu0 0
    %166 = vmatpush1.bf16.msra.mxu0 0
    %167 = vmatprep.subr.bf16.mxu0 0
    %168 = vmatpush1.bf16.msra.mxu0 0
    %169 = vmatprep.subr.bf16.mxu0 0
    %170 = vmatpush1.bf16.msra.mxu0 0
    %171 = vmatprep.mubr.bf16.mxu0 0
    %172 = vmatmul.mubr.bf16.gmra.mrb[0].mxu0 %v60
    %v173 = vpop.f32.mrb[0].mxu0
    %v174 = vadd.f32 %v89, %v173
    %v175 = vpop.f32.mrb[0].mxu0
    %v176 = vpop.f32.mrb[0].mxu0
    %v177 = vadd.f32 %v89, %v176
    %v178 = vpop.f32.mrb[0].mxu0
    %179 = vmatprep.mubr.bf16.mxu0 0
    %180 = vmatmul.mubr.bf16.gmra.mrb[0].mxu0 %v61
    %v181 = vpop.f32.mrb[0].mxu0
    %v182 = vadd.f32 %v89, %v181
    %v183 = vpop.f32.mrb[0].mxu0
    %v184 = vpop.f32.mrb[0].mxu0
    %v185 = vadd.f32 %v89, %v184
    %v186 = vpop.f32.mrb[0].mxu0
    %187 = vmatprep.mubr.bf16.mxu0 0
    %188 = vmatmul.mubr.bf16.gmra.mrb[0].mxu0 %v62
    %v189 = vpop.f32.mrb[0].mxu0
    %v190 = vadd.f32 %v89, %v189
    %v191 = vpop.f32.mrb[0].mxu0
    %v192 = vpop.f32.mrb[0].mxu0
    %v193 = vadd.f32 %v89, %v192
    %v194 = vpop.f32.mrb[0].mxu0
    %195 = vmatprep.mubr.bf16.mxu0 0
    %196 = vmatmul.mubr.bf16.gmra.mrb[0].mxu0 %v63
    %v197 = vpop.f32.mrb[0].mxu0
    %v198 = vadd.f32 %v89, %v197
    %v199 = vpop.f32.mrb[0].mxu0
    %v200 = vpop.f32.mrb[0].mxu0
    %v201 = vadd.f32 %v89, %v200
    %v202 = vpop.f32.mrb[0].mxu0
    %203 = vmatprep.mubr.bf16.mxu0 0
    %204 = vmatmul.mubr.bf16.gmra.mrb[0].mxu0 %v64
    %v205 = vpop.f32.mrb[0].mxu0
    %v206 = vadd.f32 %v89, %v205
    %v207 = vpop.f32.mrb[0].mxu0
    %v208 = vpop.f32.mrb[0].mxu0
    %v209 = vadd.f32 %v89, %v208
    %v210 = vpop.f32.mrb[0].mxu0
    %211 = vmatprep.mubr.bf16.mxu0 0
    %212 = vmatmul.mubr.bf16.gmra.mrb[0].mxu0 %v65
    %v213 = vpop.f32.mrb[0].mxu0
    %v214 = vadd.f32 %v89, %v213
    %v215 = vpop.f32.mrb[0].mxu0
    %v216 = vpop.f32.mrb[0].mxu0
    %v217 = vadd.f32 %v89, %v216
    %v218 = vpop.f32.mrb[0].mxu0
    %219 = vmatprep.mubr.bf16.mxu0 0
    %220 = vmatmul.mubr.bf16.gmra.mrb[0].mxu0 %v66
    %v221 = vpop.f32.mrb[0].mxu0
    %v222 = vadd.f32 %v89, %v221
    %v223 = vpop.f32.mrb[0].mxu0
    %v224 = vpop.f32.mrb[0].mxu0
    %v225 = vadd.f32 %v89, %v224
    %v226 = vpop.f32.mrb[0].mxu0
    %227 = vmatprep.mubr.bf16.mxu0 0
    %228 = vmatmul.mubr.bf16.gmra.mrb[0].mxu0 %v67
    %v229 = vpop.f32.mrb[0].mxu0
    %v230 = vadd.f32 %v89, %v229
    %v231 = vpop.f32.mrb[0].mxu0
    %v232 = vpop.f32.mrb[0].mxu0
    %v233 = vadd.f32 %v89, %v232
    %v234 = vpop.f32.mrb[0].mxu0
    %235 = vdwg.mxu0
    %236 = vst [vmem:[#allocation7] sm:$0xff] %v174
    %237 = vst [vmem:[#allocation7 + $0x8] sm:$0xff] %v177
    %238 = vst [vmem:[#allocation7 + $0x10] sm:$0xff] %v182
    %239 = vst [vmem:[#allocation7 + $0x18] sm:$0xff] %v185
    %240 = vst [vmem:[#allocation7 + $0x20] sm:$0xff] %v190
    %241 = vst [vmem:[#allocation7 + $0x28] sm:$0xff] %v193
    %242 = vst [vmem:[#allocation7 + $0x30] sm:$0xff] %v198
    %243 = vst [vmem:[#allocation7 + $0x38] sm:$0xff] %v201
    %244 = vst [vmem:[#allocation7 + $0x40] sm:$0xff] %v206
    %245 = vst [vmem:[#allocation7 + $0x48] sm:$0xff] %v209
    %246 = vst [vmem:[#allocation7 + $0x50] sm:$0xff] %v214
    %247 = vst [vmem:[#allocation7 + $0x58] sm:$0xff] %v217
    %248 = vst [vmem:[#allocation7 + $0x60] sm:$0xff] %v222
    %249 = vst [vmem:[#allocation7 + $0x68] sm:$0xff] %v225
    %250 = vst [vmem:[#allocation7 + $0x70] sm:$0xff] %v230
    %251 = vst [vmem:[#allocation7 + $0x78] sm:$0xff] %v233
    // Predicated region
    $region22: #{tpu_custom_call.1} parent=1 // pred_check
      _
    $region23: #{tpu_custom_call.1} parent=1 // pred_check_branch
      %253 = sbr.rel (0) target = $region25
    $region24: #{tpu_custom_call.1} parent=1 // pred_region
      %s255 = ssub.s32 2048, 2048
      %256 = vsyncadd [#allocation4], %s255
      %s257 = sshll.u32 [#allocation7], 4
      %s258 = int_to_ptr.vmem [resolvable:$true] %s257
      %263 = dma.vmem_to_hbm [thread:$0]  %s258, 2048, %s3, [#allocation4], 128, 128, 8
    $region25: #{tpu_custom_call.1} parent=1 // pred_fallthru
      _
    // Predicated region
    $region26: #{tpu_custom_call.1} parent=1 // pred_check
      _
    $region27: #{tpu_custom_call.1} parent=1 // pred_check_branch
      %265 = sbr.rel (0) target = $region29
    $region28: #{tpu_custom_call.1} parent=1 // pred_region
      %266 = dma.done [#allocation4], 2048
    $region29: #{tpu_custom_call.1} parent=1 // pred_fallthru
      _
    %267 = vsyncpa [#allocation3], 1
    %268 = vsyncpa [#allocation6], 1
    %269 = vsyncpa [#allocation4], 1

</llo_original>
